<compile_context>
chip_gen: v7x
topology: tpu7x:2x2x1
jax: 0.10.0
libtpu: 0.0.40
codegen_flags: <defaults>
</compile_context>

<pallas_src>
import functools

import jax
import jax.numpy as jnp
from jax.experimental import pallas as pl
from jax.experimental.pallas import tpu as pltpu


def _cdiv(a, b):
    return -(-a // b)


def _round_up(x, m):
    return ((x + m - 1) // m) * m


def _mlp_kernel(x_ref, w1_ref, b1_ref, w2_ref, b2_ref, o_ref):
    # Cast x tile to bf16 on the VPU (hidden under DMA) -> bf16 MXU, f32 acc.
    x = x_ref[...].astype(jnp.bfloat16)
    h = jnp.dot(x, w1_ref[...], preferred_element_type=jnp.float32)
    h = jnp.maximum(h + b1_ref[...], 0.0)            # (bb, H) + (1, H) broadcast, f32
    # Dropout(0.3): identity in inference mode.
    # TODO(synk): training-mode dropout would need pltpu.prng_seed +
    #             pltpu.prng_random_bits masking scaled by 1/(1-p).
    out = jnp.dot(h.astype(jnp.bfloat16), w2_ref[...],
                  preferred_element_type=jnp.float32)
    o_ref[...] = (out + b2_ref[...]).astype(o_ref.dtype)


@functools.partial(jax.jit, static_argnames=("block_b", "out_dtype"))
def audio_encoder_forward(x, w1, b1, w2, b2, *, block_b=2048,
                          out_dtype=jnp.float32):
    """x: (B, D_in) float32.  Weights stored (in, out).  Returns (B, H) out_dtype."""
    B, D_in = x.shape
    H = w1.shape[1]

    # Weights/biases are tiny (~0.4 MiB total) and DMA'd once (constant index
    # maps), so a one-off wrapper cast is negligible; x is NOT cast here.
    w1_bf = w1.astype(jnp.bfloat16)
    w2_bf = w2.astype(jnp.bfloat16)
    b1_f = b1.astype(jnp.float32)
    b2_f = b2.astype(jnp.float32)

    # ---- balanced batch-tile selection (no host-side pad / slice copies) ----
    grid_b = _cdiv(B, block_b)
    if grid_b < 2 and B >= 256:
        grid_b = 2                      # >=2 steps so v7x megacore can split the batch
    rows = _cdiv(B, grid_b)
    mult = 128 if rows >= 128 else 16   # 128-multiple M tiles feed the MXU (v5e);
    bb = _round_up(rows, mult)          # 16 = bf16 sublane packing for small B
    grid_b = _cdiv(B, bb)               # ragged last block is masked by Pallas

    out = pl.pallas_call(
        _mlp_kernel,
        out_shape=jax.ShapeDtypeStruct((B, H), out_dtype),
        grid_spec=pltpu.PrefetchScalarGridSpec(
            num_scalar_prefetch=0,
            grid=(grid_b,),
            in_specs=[
                pl.BlockSpec((bb, D_in), lambda i: (i, 0)),   # x tile (f32 in HBM)
                pl.BlockSpec((D_in, H), lambda i: (0, 0)),    # W1 bf16 (resident)
                pl.BlockSpec((1, H), lambda i: (0, 0)),       # b1 f32
                pl.BlockSpec((H, H), lambda i: (0, 0)),       # W2 bf16 (resident)
                pl.BlockSpec((1, H), lambda i: (0, 0)),       # b2 f32
            ],
            out_specs=pl.BlockSpec((bb, H), lambda i: (i, 0)),
        ),
        compiler_params=pltpu.CompilerParams(
            dimension_semantics=("parallel",),
            vmem_limit_bytes=48 * 1024 * 1024,
        ),
    )(x, w1_bf, b1_f, w2_bf, b2_f)

    return out


def init_params(key, input_dim=512, hidden_dim=256, dtype=jnp.float32):
    """Deterministic init mimicking nn.Linear's uniform(-1/sqrt(fan_in), ...).
    Weights are stored as (in, out) -- transpose of PyTorch's (out, in)."""
    k1, k2, k3, k4 = jax.random.split(key, 4)
    bound1 = 1.0 / jnp.sqrt(input_dim)
    bound2 = 1.0 / jnp.sqrt(hidden_dim)
    w1 = jax.random.uniform(k1, (input_dim, hidden_dim), dtype, -bound1, bound1)
    b1 = jax.random.uniform(k2, (1, hidden_dim), dtype, -bound1, bound1)
    w2 = jax.random.uniform(k3, (hidden_dim, hidden_dim), dtype, -bound2, bound2)
    b2 = jax.random.uniform(k4, (1, hidden_dim), dtype, -bound2, bound2)
    return w1, b1, w2, b2


def reference_forward(x, w1, b1, w2, b2):
    h = jnp.maximum(x @ w1 + b1, 0.0)
    return h @ w2 + b2


if __name__ == "__main__":
    key = jax.random.PRNGKey(0)
    k_x, k_p = jax.random.split(key)

    INPUT_DIM, HIDDEN_DIM, BATCH = 512, 256, 12   # B=12 exercises the ragged-tile path
    x = jax.random.normal(k_x, (BATCH, INPUT_DIM), jnp.float32)
    w1, b1, w2, b2 = init_params(k_p, INPUT_DIM, HIDDEN_DIM)

    out = audio_encoder_forward(x, w1, b1, w2, b2)
    out = jax.block_until_ready(out)

    ref = reference_forward(x, w1, b1, w2, b2)          # full-f32 reference
    assert out.shape == (BATCH, HIDDEN_DIM)
    assert out.dtype == jnp.float32
    # bf16 matmul operands -> looser tolerance than pure-f32.
    assert jnp.allclose(out, ref, atol=2e-2, rtol=2e-2), "mismatch vs reference"

    print("KERNEL_OK")
</pallas_src>

<mosaic_0001>
module attributes {stable_mosaic.version = 11 : i64} {
  func.func @_mlp_kernel(%arg0: i32, %arg1: memref<16x512xf32, #tpu.memory_space<vmem>>, %arg2: memref<512x256xbf16, #tpu.memory_space<vmem>>, %arg3: memref<1x256xf32, #tpu.memory_space<vmem>>, %arg4: memref<256x256xbf16, #tpu.memory_space<vmem>>, %arg5: memref<1x256xf32, #tpu.memory_space<vmem>>, %arg6: memref<16x256xf32, #tpu.memory_space<vmem>>) attributes {dimension_semantics = [#tpu.dimension_semantics<parallel>], iteration_bounds = array<i64: 1>, scalar_prefetch = 0 : i64, scratch_operands = 0 : i64, tpu.core_type = #tpu.core_type<tc>, window_params = [{transform_indices = @transform_0, window_bounds = array<i64: 16, 512>}, {pipeline_mode = #tpu.pipeline_mode<synchronous>, transform_indices = @transform_1, window_bounds = array<i64: 512, 256>}, {pipeline_mode = #tpu.pipeline_mode<synchronous>, transform_indices = @transform_2, window_bounds = array<i64: 1, 256>}, {pipeline_mode = #tpu.pipeline_mode<synchronous>, transform_indices = @transform_3, window_bounds = array<i64: 256, 256>}, {pipeline_mode = #tpu.pipeline_mode<synchronous>, transform_indices = @transform_4, window_bounds = array<i64: 1, 256>}, {transform_indices = @transform_5, window_bounds = array<i64: 16, 256>}]} {
    %c0 = arith.constant 0 : index
    %c0_0 = arith.constant 0 : index
    %0 = vector.load %arg1[%c0, %c0_0] : memref<16x512xf32, #tpu.memory_space<vmem>>, vector<16x512xf32>
    %1 = arith.truncf %0 : vector<16x512xf32> to vector<16x512xbf16>
    %c0_1 = arith.constant 0 : index
    %c0_2 = arith.constant 0 : index
    %2 = vector.load %arg2[%c0_1, %c0_2] : memref<512x256xbf16, #tpu.memory_space<vmem>>, vector<512x256xbf16>
    %cst = arith.constant dense<0.000000e+00> : vector<16x256xf32>
    %3 = tpu.matmul %1, %2, %cst {dimension_numbers = #tpu.dot_dimension_numbers<[1], [0], [0], [1], [0, 0, 1, 1], [], []>} : vector<16x512xbf16>, vector<512x256xbf16>, vector<16x256xf32> -> vector<16x256xf32>
    %c0_3 = arith.constant 0 : index
    %c0_4 = arith.constant 0 : index
    %4 = vector.load %arg3[%c0_3, %c0_4] : memref<1x256xf32, #tpu.memory_space<vmem>>, vector<1x256xf32>
    %5 = vector.broadcast %4 : vector<1x256xf32> to vector<16x256xf32>
    %6 = arith.addf %3, %5 : vector<16x256xf32>
    %cst_5 = arith.constant 0.000000e+00 : f32
    %7 = vector.broadcast %cst_5 : f32 to vector<16x256xf32>
    %8 = arith.maximumf %6, %7 : vector<16x256xf32>
    %9 = arith.truncf %8 : vector<16x256xf32> to vector<16x256xbf16>
    %c0_6 = arith.constant 0 : index
    %c0_7 = arith.constant 0 : index
    %10 = vector.load %arg4[%c0_6, %c0_7] : memref<256x256xbf16, #tpu.memory_space<vmem>>, vector<256x256xbf16>
    %cst_8 = arith.constant dense<0.000000e+00> : vector<16x256xf32>
    %11 = tpu.matmul %9, %10, %cst_8 {dimension_numbers = #tpu.dot_dimension_numbers<[1], [0], [0], [1], [0, 0, 1, 1], [], []>} : vector<16x256xbf16>, vector<256x256xbf16>, vector<16x256xf32> -> vector<16x256xf32>
    %c0_9 = arith.constant 0 : index
    %c0_10 = arith.constant 0 : index
    %12 = vector.load %arg5[%c0_9, %c0_10] : memref<1x256xf32, #tpu.memory_space<vmem>>, vector<1x256xf32>
    %13 = vector.broadcast %12 : vector<1x256xf32> to vector<16x256xf32>
    %14 = arith.addf %11, %13 : vector<16x256xf32>
    %c0_11 = arith.constant 0 : index
    %c0_12 = arith.constant 0 : index
    %15 = vector.load %arg6[%c0_11, %c0_12] : memref<16x256xf32, #tpu.memory_space<vmem>>, vector<16x256xf32>
    tpu.vector_store %arg6[%c0_11, %c0_12], %14 {strides = array<i32>} : memref<16x256xf32, #tpu.memory_space<vmem>>, vector<16x256xf32>,
    return
  }
  func.func @transform_0(%arg0: i32) -> (i32, i32) {
    %c0_i32 = arith.constant 0 : i32
    %c0_i32_0 = arith.constant 0 : i32
    return %arg0, %c0_i32 : i32, i32
  }
  func.func @transform_1(%arg0: i32) -> (i32, i32) {
    %c0_i32 = arith.constant 0 : i32
    %c0_i32_0 = arith.constant 0 : i32
    %c0_i32_1 = arith.constant 0 : i32
    return %c0_i32, %c0_i32_0 : i32, i32
  }
  func.func @transform_2(%arg0: i32) -> (i32, i32) {
    %c0_i32 = arith.constant 0 : i32
    %c0_i32_0 = arith.constant 0 : i32
    %c0_i32_1 = arith.constant 0 : i32
    return %c0_i32, %c0_i32_0 : i32, i32
  }
  func.func @transform_3(%arg0: i32) -> (i32, i32) {
    %c0_i32 = arith.constant 0 : i32
    %c0_i32_0 = arith.constant 0 : i32
    %c0_i32_1 = arith.constant 0 : i32
    return %c0_i32, %c0_i32_0 : i32, i32
  }
  func.func @transform_4(%arg0: i32) -> (i32, i32) {
    %c0_i32 = arith.constant 0 : i32
    %c0_i32_0 = arith.constant 0 : i32
    %c0_i32_1 = arith.constant 0 : i32
    return %c0_i32, %c0_i32_0 : i32, i32
  }
  func.func @transform_5(%arg0: i32) -> (i32, i32) {
    %c0_i32 = arith.constant 0 : i32
    %c0_i32_0 = arith.constant 0 : i32
    return %arg0, %c0_i32 : i32, i32
  }
}

</mosaic_0001>

<llo_original>
// kernel: audio_encoder_forward.1
$region0: #{audio_encoder_forward.1}
  #allocation0 [shape = 'u32[]', space=smem, size = 0x4, offset = 0x4, fixed_abs, tag = 'smem constant byte address 0x4 - core index']
  #allocation1 [shape = 'u32[144,128]{1,0:T(1,128)}', space=vmem, size = 0x12000, scoped, tag = 'internal scratch']
  %s0 = inlined_call_operand.vmem [shape: f32[12,512], index: 0, kind: input, shape index: {}]
  %s1 = inlined_call_operand.vmem [shape: bf16[512,256], index: 1, kind: input, shape index: {}]
  %s2 = inlined_call_operand.vmem [shape: f32[1,256], index: 2, kind: input, shape index: {}]
  %s3 = inlined_call_operand.vmem [shape: bf16[256,256], index: 3, kind: input, shape index: {}]
  %s4 = inlined_call_operand.vmem [shape: f32[1,256], index: 4, kind: input, shape index: {}]
  %s5 = inlined_call_operand.hbm [shape: f32[12,256], index: 5, kind: output, shape index: {}]
  %s6 = sld [smem:[#allocation0]]
  $region30: #{audio_encoder_forward.1} parent=0
    _
  %s8 = ssub.s32 1, %s6
  %s9 = scalar_select 0, %s8, %s6
  $region1: #{audio_encoder_forward.1} parent=0
    #allocation2 [shape = 'u8[16384]{0}', space=vmem, size = 0x4000, scoped, tag = 'output window, operand 0, single buffered']
    #allocation3 [shape = 's32[1]{0}', space=sflag, size = 0x4, scoped, tag = 'scoped memory for audio_encoder_forward.1']
    %10 = vsyncpa [#allocation3], 0
    // Predicated region
    $region2: #{audio_encoder_forward.1} parent=1 // pred_check
      _
    $region3: #{audio_encoder_forward.1} parent=1 // pred_check_branch
      %12 = sbr.rel (0) target = $region5
    $region4: #{audio_encoder_forward.1} parent=1 // pred_region
      _
    $region5: #{audio_encoder_forward.1} parent=1 // pred_fallthru
      _
    // Predicated region
    $region6: #{audio_encoder_forward.1} parent=1 // pred_check
      _
    $region7: #{audio_encoder_forward.1} parent=1 // pred_check_branch
      %14 = sbr.rel (0) target = $region9
    $region8: #{audio_encoder_forward.1} parent=1 // pred_region
      _
    $region9: #{audio_encoder_forward.1} parent=1 // pred_fallthru
      _
    // Predicated region
    $region10: #{audio_encoder_forward.1} parent=1 // pred_check
      _
    $region11: #{audio_encoder_forward.1} parent=1 // pred_check_branch
      %16 = sbr.rel (0) target = $region13
    $region12: #{audio_encoder_forward.1} parent=1 // pred_region
      _
    $region13: #{audio_encoder_forward.1} parent=1 // pred_fallthru
      _
    // Predicated region
    $region14: #{audio_encoder_forward.1} parent=1 // pred_check
      _
    $region15: #{audio_encoder_forward.1} parent=1 // pred_check_branch
      %18 = sbr.rel (0) target = $region17
    $region16: #{audio_encoder_forward.1} parent=1 // pred_region
      _
    $region17: #{audio_encoder_forward.1} parent=1 // pred_fallthru
      _
    // Predicated region
    $region18: #{audio_encoder_forward.1} parent=1 // pred_check
      _
    $region19: #{audio_encoder_forward.1} parent=1 // pred_check_branch
      %20 = sbr.rel (0) target = $region21
    $region20: #{audio_encoder_forward.1} parent=1 // pred_region
      _
    $region21: #{audio_encoder_forward.1} parent=1 // pred_fallthru
      _
    %v21 = vld [vmem:[%s0] sm:$0xff]
    %v22 = vld [vmem:[%s0 + $0x8] sm:$0xff]
    %v23 = vld [vmem:[%s0 + $0x10] sm:$0xff]
    %v24 = vld [vmem:[%s0 + $0x18] sm:$0xff]
    %v25 = vld [vmem:[%s0 + $0x20] sm:$0xff]
    %v26 = vld [vmem:[%s0 + $0x28] sm:$0xff]
    %v27 = vld [vmem:[%s0 + $0x30] sm:$0xff]
    %v28 = vld [vmem:[%s0 + $0x38] sm:$0xff]
    %v29 = vpack.c.bf16 %v25, %v21
    %v30 = vpack.c.bf16 %v26, %v22
    %v31 = vpack.c.bf16 %v27, %v23
    %v32 = vpack.c.bf16 %v28, %v24
    %v33 = vld [vmem:[%s1] sm:$0xff]
    %v34 = vld [vmem:[%s1 + $0x8] sm:$0xff]
    %v35 = vld [vmem:[%s1 + $0x10] sm:$0xff]
    %v36 = vld [vmem:[%s1 + $0x18] sm:$0xff]
    %v37 = vld [vmem:[%s1 + $0x20] sm:$0xff]
    %v38 = vld [vmem:[%s1 + $0x28] sm:$0xff]
    %v39 = vld [vmem:[%s1 + $0x30] sm:$0xff]
    %v40 = vld [vmem:[%s1 + $0x38] sm:$0xff]
    %v41 = vld [vmem:[%s1 + $0x40] sm:$0xff]
    %v42 = vld [vmem:[%s1 + $0x48] sm:$0xff]
    %v43 = vld [vmem:[%s1 + $0x50] sm:$0xff]
    %v44 = vld [vmem:[%s1 + $0x58] sm:$0xff]
    %v45 = vld [vmem:[%s1 + $0x60] sm:$0xff]
    %v46 = vld [vmem:[%s1 + $0x68] sm:$0xff]
    %v47 = vld [vmem:[%s1 + $0x70] sm:$0xff]
    %v48 = vld [vmem:[%s1 + $0x78] sm:$0xff]
    %v49 = vld [vmem:[%s1 + $0x80] sm:$0xff]
    %v50 = vld [vmem:[%s1 + $0x88] sm:$0xff]
    %v51 = vld [vmem:[%s1 + $0x90] sm:$0xff]
    %v52 = vld [vmem:[%s1 + $0x98] sm:$0xff]
    %v53 = vld [vmem:[%s1 + $0xa0] sm:$0xff]
    %v54 = vld [vmem:[%s1 + $0xa8] sm:$0xff]
    %v55 = vld [vmem:[%s1 + $0xb0] sm:$0xff]
    %v56 = vld [vmem:[%s1 + $0xb8] sm:$0xff]
    %v57 = vld [vmem:[%s1 + $0xc0] sm:$0xff]
    %v58 = vld [vmem:[%s1 + $0xc8] sm:$0xff]
    %v59 = vld [vmem:[%s1 + $0xd0] sm:$0xff]
    %v60 = vld [vmem:[%s1 + $0xd8] sm:$0xff]
    %v61 = vld [vmem:[%s1 + $0xe0] sm:$0xff]
    %v62 = vld [vmem:[%s1 + $0xe8] sm:$0xff]
    %v63 = vld [vmem:[%s1 + $0xf0] sm:$0xff]
    %v64 = vld [vmem:[%s1 + $0xf8] sm:$0xff]
    %v65 = vld [vmem:[%s1 + $0x100] sm:$0xff]
    %v66 = vld [vmem:[%s1 + $0x108] sm:$0xff]
    %v67 = vld [vmem:[%s1 + $0x110] sm:$0xff]
    %v68 = vld [vmem:[%s1 + $0x118] sm:$0xff]
    %v69 = vld [vmem:[%s1 + $0x120] sm:$0xff]
    %v70 = vld [vmem:[%s1 + $0x128] sm:$0xff]
    %v71 = vld [vmem:[%s1 + $0x130] sm:$0xff]
    %v72 = vld [vmem:[%s1 + $0x138] sm:$0xff]
    %v73 = vld [vmem:[%s1 + $0x140] sm:$0xff]
    %v74 = vld [vmem:[%s1 + $0x148] sm:$0xff]
    %v75 = vld [vmem:[%s1 + $0x150] sm:$0xff]
    %v76 = vld [vmem:[%s1 + $0x158] sm:$0xff]
    %v77 = vld [vmem:[%s1 + $0x160] sm:$0xff]
    %v78 = vld [vmem:[%s1 + $0x168] sm:$0xff]
    %v79 = vld [vmem:[%s1 + $0x170] sm:$0xff]
    %v80 = vld [vmem:[%s1 + $0x178] sm:$0xff]
    %v81 = vld [vmem:[%s1 + $0x180] sm:$0xff]
    %v82 = vld [vmem:[%s1 + $0x188] sm:$0xff]
    %v83 = vld [vmem:[%s1 + $0x190] sm:$0xff]
    %v84 = vld [vmem:[%s1 + $0x198] sm:$0xff]
    %v85 = vld [vmem:[%s1 + $0x1a0] sm:$0xff]
    %v86 = vld [vmem:[%s1 + $0x1a8] sm:$0xff]
    %v87 = vld [vmem:[%s1 + $0x1b0] sm:$0xff]
    %v88 = vld [vmem:[%s1 + $0x1b8] sm:$0xff]
    %v89 = vld [vmem:[%s1 + $0x1c0] sm:$0xff]
    %v90 = vld [vmem:[%s1 + $0x1c8] sm:$0xff]
    %v91 = vld [vmem:[%s1 + $0x1d0] sm:$0xff]
    %v92 = vld [vmem:[%s1 + $0x1d8] sm:$0xff]
    %v93 = vld [vmem:[%s1 + $0x1e0] sm:$0xff]
    %v94 = vld [vmem:[%s1 + $0x1e8] sm:$0xff]
    %v95 = vld [vmem:[%s1 + $0x1f0] sm:$0xff]
    %v96 = vld [vmem:[%s1 + $0x1f8] sm:$0xff]
    %v97 = vld [vmem:[%s2] sm:$0x3]
    %v99 = vlaneseq
    %v100 = vshrl.u32 %v99, 7
    %v101 = vsub.s32 0, %v100
    %v102 = vrot.slane %v97, %v101
    %v103 = vlaneseq
    %v104 = vshrl.u32 %v103, 7
    %v105 = vsub.s32 1, %v104
    %v106 = vrot.slane %v97, %v105
    %v173 = vunpack.c.l.b16 %v33
    %v174 = vunpack.c.h.b16 %v33
    %v175 = vunpack.c.l.b16 %v34
    %v176 = vunpack.c.h.b16 %v34
    %v177 = vunpack.c.l.b16 %v35
    %v178 = vunpack.c.h.b16 %v35
    %v179 = vunpack.c.l.b16 %v36
    %v180 = vunpack.c.h.b16 %v36
    %v181 = vunpack.c.l.b16 %v37
    %v182 = vunpack.c.h.b16 %v37
    %v183 = vunpack.c.l.b16 %v38
    %v184 = vunpack.c.h.b16 %v38
    %v185 = vunpack.c.l.b16 %v39
    %v186 = vunpack.c.h.b16 %v39
    %v187 = vunpack.c.l.b16 %v40
    %v188 = vunpack.c.h.b16 %v40
    %v189 = vunpack.c.l.b16 %v41
    %v190 = vunpack.c.h.b16 %v41
    %v191 = vunpack.c.l.b16 %v42
    %v192 = vunpack.c.h.b16 %v42
    %v193 = vunpack.c.l.b16 %v43
    %v194 = vunpack.c.h.b16 %v43
    %v195 = vunpack.c.l.b16 %v44
    %v196 = vunpack.c.h.b16 %v44
    %v197 = vunpack.c.l.b16 %v45
    %v198 = vunpack.c.h.b16 %v45
    %v199 = vunpack.c.l.b16 %v46
    %v200 = vunpack.c.h.b16 %v46
    %v201 = vunpack.c.l.b16 %v47
    %v202 = vunpack.c.h.b16 %v47
    %v203 = vunpack.c.l.b16 %v48
    %v204 = vunpack.c.h.b16 %v48
    %v205 = vunpack.c.l.b16 %v49
    %v206 = vunpack.c.h.b16 %v49
    %v207 = vunpack.c.l.b16 %v50
    %v208 = vunpack.c.h.b16 %v50
    %v209 = vunpack.c.l.b16 %v51
    %v210 = vunpack.c.h.b16 %v51
    %v211 = vunpack.c.l.b16 %v52
    %v212 = vunpack.c.h.b16 %v52
    %v213 = vunpack.c.l.b16 %v53
    %v214 = vunpack.c.h.b16 %v53
    %v215 = vunpack.c.l.b16 %v54
    %v216 = vunpack.c.h.b16 %v54
    %v217 = vunpack.c.l.b16 %v55
    %v218 = vunpack.c.h.b16 %v55
    %v219 = vunpack.c.l.b16 %v56
    %v220 = vunpack.c.h.b16 %v56
    %v221 = vunpack.c.l.b16 %v57
    %v222 = vunpack.c.h.b16 %v57
    %v223 = vunpack.c.l.b16 %v58
    %v224 = vunpack.c.h.b16 %v58
    %v225 = vunpack.c.l.b16 %v59
    %v226 = vunpack.c.h.b16 %v59
    %v227 = vunpack.c.l.b16 %v60
    %v228 = vunpack.c.h.b16 %v60
    %v229 = vunpack.c.l.b16 %v61
    %v230 = vunpack.c.h.b16 %v61
    %v231 = vunpack.c.l.b16 %v62
    %v232 = vunpack.c.h.b16 %v62
    %v233 = vunpack.c.l.b16 %v63
    %v234 = vunpack.c.h.b16 %v63
    %v235 = vunpack.c.l.b16 %v64
    %v236 = vunpack.c.h.b16 %v64
    %v237 = vunpack.c.l.b16 %v65
    %v238 = vunpack.c.h.b16 %v65
    %v239 = vunpack.c.l.b16 %v66
    %v240 = vunpack.c.h.b16 %v66
    %v241 = vunpack.c.l.b16 %v67
    %v242 = vunpack.c.h.b16 %v67
    %v243 = vunpack.c.l.b16 %v68
    %v244 = vunpack.c.h.b16 %v68
    %v245 = vunpack.c.l.b16 %v69
    %v246 = vunpack.c.h.b16 %v69
    %v247 = vunpack.c.l.b16 %v70
    %v248 = vunpack.c.h.b16 %v70
    %v249 = vunpack.c.l.b16 %v71
    %v250 = vunpack.c.h.b16 %v71
    %v251 = vunpack.c.l.b16 %v72
    %v252 = vunpack.c.h.b16 %v72
    %v253 = vunpack.c.l.b16 %v73
    %v254 = vunpack.c.h.b16 %v73
    %v255 = vunpack.c.l.b16 %v74
    %v256 = vunpack.c.h.b16 %v74
    %v257 = vunpack.c.l.b16 %v75
    %v258 = vunpack.c.h.b16 %v75
    %v259 = vunpack.c.l.b16 %v76
    %v260 = vunpack.c.h.b16 %v76
    %v261 = vunpack.c.l.b16 %v77
    %v262 = vunpack.c.h.b16 %v77
    %v263 = vunpack.c.l.b16 %v78
    %v264 = vunpack.c.h.b16 %v78
    %v265 = vunpack.c.l.b16 %v79
    %v266 = vunpack.c.h.b16 %v79
    %v267 = vunpack.c.l.b16 %v80
    %v268 = vunpack.c.h.b16 %v80
    %v269 = vunpack.c.l.b16 %v81
    %v270 = vunpack.c.h.b16 %v81
    %v271 = vunpack.c.l.b16 %v82
    %v272 = vunpack.c.h.b16 %v82
    %v273 = vunpack.c.l.b16 %v83
    %v274 = vunpack.c.h.b16 %v83
    %v275 = vunpack.c.l.b16 %v84
    %v276 = vunpack.c.h.b16 %v84
    %v277 = vunpack.c.l.b16 %v85
    %v278 = vunpack.c.h.b16 %v85
    %v279 = vunpack.c.l.b16 %v86
    %v280 = vunpack.c.h.b16 %v86
    %v281 = vunpack.c.l.b16 %v87
    %v282 = vunpack.c.h.b16 %v87
    %v283 = vunpack.c.l.b16 %v88
    %v284 = vunpack.c.h.b16 %v88
    %v285 = vunpack.c.l.b16 %v89
    %v286 = vunpack.c.h.b16 %v89
    %v287 = vunpack.c.l.b16 %v90
    %v288 = vunpack.c.h.b16 %v90
    %v289 = vunpack.c.l.b16 %v91
    %v290 = vunpack.c.h.b16 %v91
    %v291 = vunpack.c.l.b16 %v92
    %v292 = vunpack.c.h.b16 %v92
    %v293 = vunpack.c.l.b16 %v93
    %v294 = vunpack.c.h.b16 %v93
    %v295 = vunpack.c.l.b16 %v94
    %v296 = vunpack.c.h.b16 %v94
    %v297 = vunpack.c.l.b16 %v95
    %v298 = vunpack.c.h.b16 %v95
    %v299 = vunpack.c.l.b16 %v96
    %v300 = vunpack.c.h.b16 %v96
    %v301 = vpack.c.b16 %v175, %v173
    %v302 = vpack.c.b16 %v176, %v174
    %v303 = vpack.c.b16 %v179, %v177
    %v304 = vpack.c.b16 %v180, %v178
    %v305 = vpack.c.b16 %v183, %v181
    %v306 = vpack.c.b16 %v184, %v182
    %v307 = vpack.c.b16 %v187, %v185
    %v308 = vpack.c.b16 %v188, %v186
    %v309 = vpack.c.b16 %v191, %v189
    %v310 = vpack.c.b16 %v192, %v190
    %v311 = vpack.c.b16 %v195, %v193
    %v312 = vpack.c.b16 %v196, %v194
    %v313 = vpack.c.b16 %v199, %v197
    %v314 = vpack.c.b16 %v200, %v198
    %v315 = vpack.c.b16 %v203, %v201
    %v316 = vpack.c.b16 %v204, %v202
    %v317 = vpack.c.b16 %v207, %v205
    %v318 = vpack.c.b16 %v208, %v206
    %v319 = vpack.c.b16 %v211, %v209
    %v320 = vpack.c.b16 %v212, %v210
    %v321 = vpack.c.b16 %v215, %v213
    %v322 = vpack.c.b16 %v216, %v214
    %v323 = vpack.c.b16 %v219, %v217
    %v324 = vpack.c.b16 %v220, %v218
    %v325 = vpack.c.b16 %v223, %v221
    %v326 = vpack.c.b16 %v224, %v222
    %v327 = vpack.c.b16 %v227, %v225
    %v328 = vpack.c.b16 %v228, %v226
    %v329 = vpack.c.b16 %v231, %v229
    %v330 = vpack.c.b16 %v232, %v230
    %v331 = vpack.c.b16 %v235, %v233
    %v332 = vpack.c.b16 %v236, %v234
    %v333 = vpack.c.b16 %v239, %v237
    %v334 = vpack.c.b16 %v240, %v238
    %v335 = vpack.c.b16 %v243, %v241
    %v336 = vpack.c.b16 %v244, %v242
    %v337 = vpack.c.b16 %v247, %v245
    %v338 = vpack.c.b16 %v248, %v246
    %v339 = vpack.c.b16 %v251, %v249
    %v340 = vpack.c.b16 %v252, %v250
    %v341 = vpack.c.b16 %v255, %v253
    %v342 = vpack.c.b16 %v256, %v254
    %v343 = vpack.c.b16 %v259, %v257
    %v344 = vpack.c.b16 %v260, %v258
    %v345 = vpack.c.b16 %v263, %v261
    %v346 = vpack.c.b16 %v264, %v262
    %v347 = vpack.c.b16 %v267, %v265
    %v348 = vpack.c.b16 %v268, %v266
    %v349 = vpack.c.b16 %v271, %v269
    %v350 = vpack.c.b16 %v272, %v270
    %v351 = vpack.c.b16 %v275, %v273
    %v352 = vpack.c.b16 %v276, %v274
    %v353 = vpack.c.b16 %v279, %v277
    %v354 = vpack.c.b16 %v280, %v278
    %v355 = vpack.c.b16 %v283, %v281
    %v356 = vpack.c.b16 %v284, %v282
    %v357 = vpack.c.b16 %v287, %v285
    %v358 = vpack.c.b16 %v288, %v286
    %v359 = vpack.c.b16 %v291, %v289
    %v360 = vpack.c.b16 %v292, %v290
    %v361 = vpack.c.b16 %v295, %v293
    %v362 = vpack.c.b16 %v296, %v294
    %v363 = vpack.c.b16 %v299, %v297
    %v364 = vpack.c.b16 %v300, %v298
    %429 = vmatprep.subr.bf16.mxu0 %v302
    %430 = vmatpush1.bf16.msra.mxu0 %v301
    %431 = vmatprep.subr.bf16.mxu0 %v304
    %432 = vmatpush1.bf16.msra.mxu0 %v303
    %433 = vmatprep.subr.bf16.mxu0 %v306
    %434 = vmatpush1.bf16.msra.mxu0 %v305
    %435 = vmatprep.subr.bf16.mxu0 %v308
    %436 = vmatpush1.bf16.msra.mxu0 %v307
    %437 = vmatprep.subr.bf16.mxu0 %v310
    %438 = vmatpush1.bf16.msra.mxu0 %v309
    %439 = vmatprep.subr.bf16.mxu0 %v312
    %440 = vmatpush1.bf16.msra.mxu0 %v311
    %441 = vmatprep.subr.bf16.mxu0 %v314
    %442 = vmatpush1.bf16.msra.mxu0 %v313
    %443 = vmatprep.subr.bf16.mxu0 %v316
    %444 = vmatpush1.bf16.msra.mxu0 %v315
    %445 = vmatprep.subr.bf16.mxu0 %v318
    %446 = vmatpush1.bf16.msra.mxu0 %v317
    %447 = vmatprep.subr.bf16.mxu0 %v320
    %448 = vmatpush1.bf16.msra.mxu0 %v319
    %449 = vmatprep.subr.bf16.mxu0 %v322
    %450 = vmatpush1.bf16.msra.mxu0 %v321
    %451 = vmatprep.subr.bf16.mxu0 %v324
    %452 = vmatpush1.bf16.msra.mxu0 %v323
    %453 = vmatprep.subr.bf16.mxu0 %v326
    %454 = vmatpush1.bf16.msra.mxu0 %v325
    %455 = vmatprep.subr.bf16.mxu0 %v328
    %456 = vmatpush1.bf16.msra.mxu0 %v327
    %457 = vmatprep.subr.bf16.mxu0 %v330
    %458 = vmatpush1.bf16.msra.mxu0 %v329
    %459 = vmatprep.subr.bf16.mxu0 %v332
    %460 = vmatpush1.bf16.msra.mxu0 %v331
    %461 = vmatprep.mubr.bf16.mxu0 %v30
    %462 = vmatmul.mubr.bf16.gmra.mrb[0].mxu0 %v29
    %v463 = vpop.f32.mrb[0].mxu0
    %v464 = vadd.f32 %v102, %v463
    %v465 = vpop.f32.mrb[0].mxu0
    %v466 = vadd.f32 %v106, %v465
    %v467 = vpop.f32.mrb[0].mxu0
    %v468 = vadd.f32 %v102, %v467
    %v469 = vpop.f32.mrb[0].mxu0
    %v470 = vadd.f32 %v106, %v469
    %471 = vdwg.mxu0
    %472 = vmatprep.subr.bf16.mxu0 %v334
    %473 = vmatpush1.bf16.msra.mxu0 %v333
    %474 = vmatprep.subr.bf16.mxu0 %v336
    %475 = vmatpush1.bf16.msra.mxu0 %v335
    %476 = vmatprep.subr.bf16.mxu0 %v338
    %477 = vmatpush1.bf16.msra.mxu0 %v337
    %478 = vmatprep.subr.bf16.mxu0 %v340
    %479 = vmatpush1.bf16.msra.mxu0 %v339
    %480 = vmatprep.subr.bf16.mxu0 %v342
    %481 = vmatpush1.bf16.msra.mxu0 %v341
    %482 = vmatprep.subr.bf16.mxu0 %v344
    %483 = vmatpush1.bf16.msra.mxu0 %v343
    %484 = vmatprep.subr.bf16.mxu0 %v346
    %485 = vmatpush1.bf16.msra.mxu0 %v345
    %486 = vmatprep.subr.bf16.mxu0 %v348
    %487 = vmatpush1.bf16.msra.mxu0 %v347
    %488 = vmatprep.subr.bf16.mxu0 %v350
    %489 = vmatpush1.bf16.msra.mxu0 %v349
    %490 = vmatprep.subr.bf16.mxu0 %v352
    %491 = vmatpush1.bf16.msra.mxu0 %v351
    %492 = vmatprep.subr.bf16.mxu0 %v354
    %493 = vmatpush1.bf16.msra.mxu0 %v353
    %494 = vmatprep.subr.bf16.mxu0 %v356
    %495 = vmatpush1.bf16.msra.mxu0 %v355
    %496 = vmatprep.subr.bf16.mxu0 %v358
    %497 = vmatpush1.bf16.msra.mxu0 %v357
    %498 = vmatprep.subr.bf16.mxu0 %v360
    %499 = vmatpush1.bf16.msra.mxu0 %v359
    %500 = vmatprep.subr.bf16.mxu0 %v362
    %501 = vmatpush1.bf16.msra.mxu0 %v361
    %502 = vmatprep.subr.bf16.mxu0 %v364
    %503 = vmatpush1.bf16.msra.mxu0 %v363
    %504 = vmatprep.mubr.bf16.mxu0 %v32
    %505 = vmatmul.mubr.bf16.gmra.mrb[0].mxu0 %v31
    %v506 = vpop.f32.mrb[0].mxu0
    %v507 = vadd.f32 %v464, %v506
    %v508 = vpop.f32.mrb[0].mxu0
    %v509 = vadd.f32 %v466, %v508
    %v510 = vpop.f32.mrb[0].mxu0
    %v511 = vadd.f32 %v468, %v510
    %v512 = vpop.f32.mrb[0].mxu0
    %v513 = vadd.f32 %v470, %v512
    %514 = vdwg.mxu0
    %v515 = vmax.f32 %v507, 0.0
    %v516 = vmax.f32 %v509, 0.0
    %v517 = vmax.f32 %v511, 0.0
    %v518 = vmax.f32 %v513, 0.0
    %v519 = vpack.c.bf16 %v517, %v515
    %v520 = vpack.c.bf16 %v518, %v516
    %v521 = vld [vmem:[%s3] sm:$0xff]
    %v522 = vld [vmem:[%s3 + $0x8] sm:$0xff]
    %v523 = vld [vmem:[%s3 + $0x10] sm:$0xff]
    %v524 = vld [vmem:[%s3 + $0x18] sm:$0xff]
    %v525 = vld [vmem:[%s3 + $0x20] sm:$0xff]
    %v526 = vld [vmem:[%s3 + $0x28] sm:$0xff]
    %v527 = vld [vmem:[%s3 + $0x30] sm:$0xff]
    %v528 = vld [vmem:[%s3 + $0x38] sm:$0xff]
    %v529 = vld [vmem:[%s3 + $0x40] sm:$0xff]
    %v530 = vld [vmem:[%s3 + $0x48] sm:$0xff]
    %v531 = vld [vmem:[%s3 + $0x50] sm:$0xff]
    %v532 = vld [vmem:[%s3 + $0x58] sm:$0xff]
    %v533 = vld [vmem:[%s3 + $0x60] sm:$0xff]
    %v534 = vld [vmem:[%s3 + $0x68] sm:$0xff]
    %v535 = vld [vmem:[%s3 + $0x70] sm:$0xff]
    %v536 = vld [vmem:[%s3 + $0x78] sm:$0xff]
    %v537 = vld [vmem:[%s3 + $0x80] sm:$0xff]
    %v538 = vld [vmem:[%s3 + $0x88] sm:$0xff]
    %v539 = vld [vmem:[%s3 + $0x90] sm:$0xff]
    %v540 = vld [vmem:[%s3 + $0x98] sm:$0xff]
    %v541 = vld [vmem:[%s3 + $0xa0] sm:$0xff]
    %v542 = vld [vmem:[%s3 + $0xa8] sm:$0xff]
    %v543 = vld [vmem:[%s3 + $0xb0] sm:$0xff]
    %v544 = vld [vmem:[%s3 + $0xb8] sm:$0xff]
    %v545 = vld [vmem:[%s3 + $0xc0] sm:$0xff]
    %v546 = vld [vmem:[%s3 + $0xc8] sm:$0xff]
    %v547 = vld [vmem:[%s3 + $0xd0] sm:$0xff]
    %v548 = vld [vmem:[%s3 + $0xd8] sm:$0xff]
    %v549 = vld [vmem:[%s3 + $0xe0] sm:$0xff]
    %v550 = vld [vmem:[%s3 + $0xe8] sm:$0xff]
    %v551 = vld [vmem:[%s3 + $0xf0] sm:$0xff]
    %v552 = vld [vmem:[%s3 + $0xf8] sm:$0xff]
    %v553 = vld [vmem:[%s4] sm:$0x3]
    %v555 = vlaneseq
    %v556 = vshrl.u32 %v555, 7
    %v557 = vsub.s32 0, %v556
    %v558 = vrot.slane %v553, %v557
    %v559 = vlaneseq
    %v560 = vshrl.u32 %v559, 7
    %v561 = vsub.s32 1, %v560
    %v562 = vrot.slane %v553, %v561
    %v597 = vunpack.c.l.b16 %v521
    %v598 = vunpack.c.h.b16 %v521
    %v599 = vunpack.c.l.b16 %v522
    %v600 = vunpack.c.h.b16 %v522
    %v601 = vunpack.c.l.b16 %v523
    %v602 = vunpack.c.h.b16 %v523
    %v603 = vunpack.c.l.b16 %v524
    %v604 = vunpack.c.h.b16 %v524
    %v605 = vunpack.c.l.b16 %v525
    %v606 = vunpack.c.h.b16 %v525
    %v607 = vunpack.c.l.b16 %v526
    %v608 = vunpack.c.h.b16 %v526
    %v609 = vunpack.c.l.b16 %v527
    %v610 = vunpack.c.h.b16 %v527
    %v611 = vunpack.c.l.b16 %v528
    %v612 = vunpack.c.h.b16 %v528
    %v613 = vunpack.c.l.b16 %v529
    %v614 = vunpack.c.h.b16 %v529
    %v615 = vunpack.c.l.b16 %v530
    %v616 = vunpack.c.h.b16 %v530
    %v617 = vunpack.c.l.b16 %v531
    %v618 = vunpack.c.h.b16 %v531
    %v619 = vunpack.c.l.b16 %v532
    %v620 = vunpack.c.h.b16 %v532
    %v621 = vunpack.c.l.b16 %v533
    %v622 = vunpack.c.h.b16 %v533
    %v623 = vunpack.c.l.b16 %v534
    %v624 = vunpack.c.h.b16 %v534
    %v625 = vunpack.c.l.b16 %v535
    %v626 = vunpack.c.h.b16 %v535
    %v627 = vunpack.c.l.b16 %v536
    %v628 = vunpack.c.h.b16 %v536
    %v629 = vunpack.c.l.b16 %v537
    %v630 = vunpack.c.h.b16 %v537
    %v631 = vunpack.c.l.b16 %v538
    %v632 = vunpack.c.h.b16 %v538
    %v633 = vunpack.c.l.b16 %v539
    %v634 = vunpack.c.h.b16 %v539
    %v635 = vunpack.c.l.b16 %v540
    %v636 = vunpack.c.h.b16 %v540
    %v637 = vunpack.c.l.b16 %v541
    %v638 = vunpack.c.h.b16 %v541
    %v639 = vunpack.c.l.b16 %v542
    %v640 = vunpack.c.h.b16 %v542
    %v641 = vunpack.c.l.b16 %v543
    %v642 = vunpack.c.h.b16 %v543
    %v643 = vunpack.c.l.b16 %v544
    %v644 = vunpack.c.h.b16 %v544
    %v645 = vunpack.c.l.b16 %v545
    %v646 = vunpack.c.h.b16 %v545
    %v647 = vunpack.c.l.b16 %v546
    %v648 = vunpack.c.h.b16 %v546
    %v649 = vunpack.c.l.b16 %v547
    %v650 = vunpack.c.h.b16 %v547
    %v651 = vunpack.c.l.b16 %v548
    %v652 = vunpack.c.h.b16 %v548
    %v653 = vunpack.c.l.b16 %v549
    %v654 = vunpack.c.h.b16 %v549
    %v655 = vunpack.c.l.b16 %v550
    %v656 = vunpack.c.h.b16 %v550
    %v657 = vunpack.c.l.b16 %v551
    %v658 = vunpack.c.h.b16 %v551
    %v659 = vunpack.c.l.b16 %v552
    %v660 = vunpack.c.h.b16 %v552
    %v661 = vpack.c.b16 %v599, %v597
    %v662 = vpack.c.b16 %v600, %v598
    %v663 = vpack.c.b16 %v603, %v601
    %v664 = vpack.c.b16 %v604, %v602
    %v665 = vpack.c.b16 %v607, %v605
    %v666 = vpack.c.b16 %v608, %v606
    %v667 = vpack.c.b16 %v611, %v609
    %v668 = vpack.c.b16 %v612, %v610
    %v669 = vpack.c.b16 %v615, %v613
    %v670 = vpack.c.b16 %v616, %v614
    %v671 = vpack.c.b16 %v619, %v617
    %v672 = vpack.c.b16 %v620, %v618
    %v673 = vpack.c.b16 %v623, %v621
    %v674 = vpack.c.b16 %v624, %v622
    %v675 = vpack.c.b16 %v627, %v625
    %v676 = vpack.c.b16 %v628, %v626
    %v677 = vpack.c.b16 %v631, %v629
    %v678 = vpack.c.b16 %v632, %v630
    %v679 = vpack.c.b16 %v635, %v633
    %v680 = vpack.c.b16 %v636, %v634
    %v681 = vpack.c.b16 %v639, %v637
    %v682 = vpack.c.b16 %v640, %v638
    %v683 = vpack.c.b16 %v643, %v641
    %v684 = vpack.c.b16 %v644, %v642
    %v685 = vpack.c.b16 %v647, %v645
    %v686 = vpack.c.b16 %v648, %v646
    %v687 = vpack.c.b16 %v651, %v649
    %v688 = vpack.c.b16 %v652, %v650
    %v689 = vpack.c.b16 %v655, %v653
    %v690 = vpack.c.b16 %v656, %v654
    %v691 = vpack.c.b16 %v659, %v657
    %v692 = vpack.c.b16 %v660, %v658
    %725 = vmatprep.subr.bf16.mxu0 %v662
    %726 = vmatpush1.bf16.msra.mxu0 %v661
    %727 = vmatprep.subr.bf16.mxu0 %v664
    %728 = vmatpush1.bf16.msra.mxu0 %v663
    %729 = vmatprep.subr.bf16.mxu0 %v666
    %730 = vmatpush1.bf16.msra.mxu0 %v665
    %731 = vmatprep.subr.bf16.mxu0 %v668
    %732 = vmatpush1.bf16.msra.mxu0 %v667
    %733 = vmatprep.subr.bf16.mxu0 %v670
    %734 = vmatpush1.bf16.msra.mxu0 %v669
    %735 = vmatprep.subr.bf16.mxu0 %v672
    %736 = vmatpush1.bf16.msra.mxu0 %v671
    %737 = vmatprep.subr.bf16.mxu0 %v674
    %738 = vmatpush1.bf16.msra.mxu0 %v673
    %739 = vmatprep.subr.bf16.mxu0 %v676
    %740 = vmatpush1.bf16.msra.mxu0 %v675
    %741 = vmatprep.subr.bf16.mxu0 %v678
    %742 = vmatpush1.bf16.msra.mxu0 %v677
    %743 = vmatprep.subr.bf16.mxu0 %v680
    %744 = vmatpush1.bf16.msra.mxu0 %v679
    %745 = vmatprep.subr.bf16.mxu0 %v682
    %746 = vmatpush1.bf16.msra.mxu0 %v681
    %747 = vmatprep.subr.bf16.mxu0 %v684
    %748 = vmatpush1.bf16.msra.mxu0 %v683
    %749 = vmatprep.subr.bf16.mxu0 %v686
    %750 = vmatpush1.bf16.msra.mxu0 %v685
    %751 = vmatprep.subr.bf16.mxu0 %v688
    %752 = vmatpush1.bf16.msra.mxu0 %v687
    %753 = vmatprep.subr.bf16.mxu0 %v690
    %754 = vmatpush1.bf16.msra.mxu0 %v689
    %755 = vmatprep.subr.bf16.mxu0 %v692
    %756 = vmatpush1.bf16.msra.mxu0 %v691
    %757 = vmatprep.mubr.bf16.mxu0 %v520
    %758 = vmatmul.mubr.bf16.gmra.mrb[0].mxu0 %v519
    %v759 = vpop.f32.mrb[0].mxu0
    %v760 = vadd.f32 %v558, %v759
    %v761 = vpop.f32.mrb[0].mxu0
    %v762 = vadd.f32 %v562, %v761
    %v763 = vpop.f32.mrb[0].mxu0
    %v764 = vadd.f32 %v558, %v763
    %v765 = vpop.f32.mrb[0].mxu0
    %v766 = vadd.f32 %v562, %v765
    %767 = vdwg.mxu0
    %768 = vst [vmem:[#allocation2] sm:$0xff] %v760
    %769 = vst [vmem:[#allocation2 + $0x8] sm:$0xff] %v762
    %770 = vst [vmem:[#allocation2 + $0x10] sm:$0xff] %v764
    %771 = vst [vmem:[#allocation2 + $0x18] sm:$0xff] %v766
    // Predicated region
    $region22: #{audio_encoder_forward.1} parent=1 // pred_check
      _
    $region23: #{audio_encoder_forward.1} parent=1 // pred_check_branch
      %773 = sbr.rel (0) target = $region25
    $region24: #{audio_encoder_forward.1} parent=1 // pred_region
      %s775 = ssub.s32 512, 512
      %776 = vsyncadd [#allocation3], %s775
      %s777 = sshll.u32 [#allocation2], 4
      %s778 = int_to_ptr.vmem [resolvable:$true] %s777
      %783 = dma.vmem_to_hbm [thread:$0]  %s778, 512, %s5, [#allocation3], 256, 256, 16
    $region25: #{audio_encoder_forward.1} parent=1 // pred_fallthru
      _
    // Predicated region
    $region26: #{audio_encoder_forward.1} parent=1 // pred_check
      _
    $region27: #{audio_encoder_forward.1} parent=1 // pred_check_branch
      %785 = sbr.rel (0) target = $region29
    $region28: #{audio_encoder_forward.1} parent=1 // pred_region
      %786 = dma.done [#allocation3], 512
    $region29: #{audio_encoder_forward.1} parent=1 // pred_fallthru
      _
    %787 = vsyncpa [#allocation3], 1

</llo_original>
